<compile_context>
chip_gen: v6e
topology: v6e:2x2x1
jax: 0.10.0
libtpu: 0.0.40
codegen_flags: <defaults>
</compile_context>

<pallas_src>
import functools

import jax
import jax.numpy as jnp
from jax.experimental import pallas as pl
from jax.experimental.pallas import tpu as pltpu


def _round_up(x, m):
    return (x + m - 1) // m * m


def _pad2d(a, rows, cols):
    r, c = a.shape
    return jnp.pad(a, ((0, rows - r), (0, cols - c)))


# --------------------------------------------------------------------------
# Kernel 1: support = x @ W     (row-tiled, full W block)
# --------------------------------------------------------------------------
def _xw_kernel(x_ref, w_ref, o_ref):
    o_ref[...] = jnp.dot(
        x_ref[...], w_ref[...], preferred_element_type=jnp.float32
    ).astype(o_ref.dtype)


# --------------------------------------------------------------------------
# Kernel 2: out = adj @ support + b (+ReLU)   (row tiles x neighbor tiles)
# --------------------------------------------------------------------------
def _agg_kernel(adj_ref, s_ref, b_ref, o_ref, acc_ref, *, apply_relu):
    k = pl.program_id(1)

    @pl.when(k == 0)
    def _():
        acc_ref[...] = jnp.zeros_like(acc_ref)

    acc_ref[...] += jnp.dot(
        adj_ref[...], s_ref[...], preferred_element_type=jnp.float32
    )

    @pl.when(k == pl.num_programs(1) - 1)
    def _():
        # Bias + ReLU only in the epilogue (f32 on the VPU), then cast on store.
        out = acc_ref[...] + b_ref[...]
        if apply_relu:
            out = jnp.maximum(out, 0.0)
        o_ref[...] = out.astype(o_ref.dtype)


# --------------------------------------------------------------------------
# One GraphConvolution layer: adj @ (x @ W) + b, optional ReLU.
# x:[Np,Fin] bf16, adj:[Np,Np] bf16, w:[Fin,Fout] bf16, b:[1,Fout] f32.
# --------------------------------------------------------------------------
def _gc_layer(x, adj, w, b, *, apply_relu, out_dtype, tile):
    n_pad, fin = x.shape
    fout = w.shape[1]
    m_tiles = n_pad // tile
    k_tiles = n_pad // tile
    out_bytes = jnp.dtype(out_dtype).itemsize

    # Pass 1: support = x @ W  (stored bf16, lane-dense fout)
    support = pl.pallas_call(
        _xw_kernel,
        out_shape=jax.ShapeDtypeStruct((n_pad, fout), jnp.bfloat16),
        grid=(m_tiles,),
        in_specs=[
            pl.BlockSpec((tile, fin), lambda i: (i, 0)),
            pl.BlockSpec((fin, fout), lambda i: (0, 0)),
        ],
        out_specs=pl.BlockSpec((tile, fout), lambda i: (i, 0)),
        compiler_params=pltpu.CompilerParams(
            dimension_semantics=("parallel",)
        ),
        cost_estimate=pl.CostEstimate(
            flops=2 * n_pad * fin * fout,
            transcendentals=0,
            bytes_accessed=2 * (n_pad * fin + fin * fout + n_pad * fout),
        ),
    )(x, w)

    # Pass 2: out = adj @ support + b (+ReLU), reduction over neighbor tiles.
    agg = functools.partial(_agg_kernel, apply_relu=apply_relu)
    out = pl.pallas_call(
        agg,
        out_shape=jax.ShapeDtypeStruct((n_pad, fout), out_dtype),
        grid=(m_tiles, k_tiles),
        in_specs=[
            pl.BlockSpec((tile, tile), lambda i, k: (i, k)),   # adj tile
            pl.BlockSpec((tile, fout), lambda i, k: (k, 0)),   # support rows
            pl.BlockSpec((1, fout), lambda i, k: (0, 0)),      # bias
        ],
        out_specs=pl.BlockSpec((tile, fout), lambda i, k: (i, 0)),
        scratch_shapes=[pltpu.VMEM((tile, fout), jnp.float32)],
        compiler_params=pltpu.CompilerParams(
            dimension_semantics=("parallel", "arbitrary")
        ),
        cost_estimate=pl.CostEstimate(
            flops=2 * n_pad * n_pad * fout,
            transcendentals=0,
            bytes_accessed=2 * (n_pad * n_pad + n_pad * fout)
            + out_bytes * n_pad * fout,
        ),
    )(adj, support, b)
    return out


# --------------------------------------------------------------------------
# Full GCN forward (eval mode): relu(gc1(x, adj)) -> gc2(., adj)
# --------------------------------------------------------------------------
def gcn_forward(x, adj, w1, b1, w2, b2, *, tile=256):
    n, nfeat = x.shape
    nhid = w1.shape[1]
    nout = w2.shape[1]

    # Tile size: 256 for big graphs, otherwise the 8-padded node count.
    t = min(tile, _round_up(n, 8))
    n_pad = _round_up(n, t)
    f_in = _round_up(nfeat, 128)
    f_hid = _round_up(nhid, 128)
    f_out = _round_up(nout, 128)

    # Pad + cast (bf16 operands, f32 biases). Zero padding keeps semantics.
    xb = _pad2d(x, n_pad, f_in).astype(jnp.bfloat16)
    adjb = _pad2d(adj, n_pad, n_pad).astype(jnp.bfloat16)
    w1b = _pad2d(w1, f_in, f_hid).astype(jnp.bfloat16)
    w2b = _pad2d(w2, f_hid, f_out).astype(jnp.bfloat16)
    b1p = _pad2d(b1.reshape(1, -1), 1, f_hid).astype(jnp.float32)
    b2p = _pad2d(b2.reshape(1, -1), 1, f_out).astype(jnp.float32)

    # Layer 1 (+ReLU). Dropout in eval mode is identity.
    h = _gc_layer(xb, adjb, w1b, b1p, apply_relu=True,
                  out_dtype=jnp.bfloat16, tile=t)
    # Layer 2 (no activation), f32 output.
    out = _gc_layer(h, adjb, w2b, b2p, apply_relu=False,
                    out_dtype=jnp.float32, tile=t)

    return out[:n, :nout]


def init_gc_params(key, in_features, out_features):
    # Mirrors GraphConvolution.reset_parameters: uniform(-stdv, stdv),
    # stdv = 1 / sqrt(out_features)
    stdv = 1.0 / (out_features ** 0.5)
    kw, kb = jax.random.split(key)
    w = jax.random.uniform(kw, (in_features, out_features), jnp.float32, -stdv, stdv)
    b = jax.random.uniform(kb, (1, out_features), jnp.float32, -stdv, stdv)
    return w, b


if __name__ == "__main__":
    # Small synthetic problem: N=16 nodes, nfeat=32, nhid=64, out=16
    N, NFEAT, NHID, NOUT = 16, 32, 64, 16
    DROPOUT = 0.5  # unused in eval-mode forward

    key = jax.random.PRNGKey(0)
    kx, kadj, k1, k2 = jax.random.split(key, 4)

    x = jax.random.normal(kx, (N, NFEAT), jnp.float32)

    # Symmetric row-normalized adjacency with self-loops (typical GCN input).
    a = (jax.random.uniform(kadj, (N, N)) < 0.3).astype(jnp.float32)
    a = jnp.maximum(a, a.T) + jnp.eye(N, dtype=jnp.float32)
    adj = a / jnp.sum(a, axis=1, keepdims=True)

    w1, b1 = init_gc_params(k1, NFEAT, NHID)
    w2, b2 = init_gc_params(k2, NHID, NOUT)

    out = gcn_forward(x, adj, w1, b1, w2, b2)
    out = jax.block_until_ready(out)
    assert out.shape == (N, NOUT)

    # Reference 1: mirror the kernel's bf16 casts (tight tolerance).
    f32 = jnp.float32
    xq = x.astype(jnp.bfloat16).astype(f32)
    aq = adj.astype(jnp.bfloat16).astype(f32)
    w1q = w1.astype(jnp.bfloat16).astype(f32)
    w2q = w2.astype(jnp.bfloat16).astype(f32)
    s1 = (xq @ w1q).astype(jnp.bfloat16).astype(f32)
    h_ref = jnp.maximum(aq @ s1 + b1, 0.0).astype(jnp.bfloat16).astype(f32)
    s2 = (h_ref @ w2q).astype(jnp.bfloat16).astype(f32)
    ref_q = aq @ s2 + b2
    assert jnp.allclose(out, ref_q, atol=2e-3, rtol=2e-3)

    # Reference 2: pure f32 module semantics (loose tolerance for bf16 inputs).
    ref = jnp.maximum(adj @ (x @ w1) + b1, 0.0)
    ref = adj @ (ref @ w2) + b2
    assert jnp.allclose(out, ref, atol=1e-1, rtol=1e-1)

    print("KERNEL_OK")
</pallas_src>

<mosaic_0001>
module attributes {stable_mosaic.version = 11 : i64} {
  func.func @_xw_kernel(%arg0: i32, %arg1: memref<16x128xbf16, #tpu.memory_space<vmem>>, %arg2: memref<128x128xbf16, #tpu.memory_space<vmem>>, %arg3: memref<16x128xbf16, #tpu.memory_space<vmem>>) attributes {dimension_semantics = [#tpu.dimension_semantics<parallel>], iteration_bounds = array<i64: 1>, scalar_prefetch = 0 : i64, scratch_operands = 0 : i64, tpu.core_type = #tpu.core_type<tc>, window_params = [{transform_indices = @transform_0, window_bounds = array<i64: 16, 128>}, {pipeline_mode = #tpu.pipeline_mode<synchronous>, transform_indices = @transform_1, window_bounds = array<i64: 128, 128>}, {transform_indices = @transform_2, window_bounds = array<i64: 16, 128>}]} {
    %c0 = arith.constant 0 : index
    %c0_0 = arith.constant 0 : index
    %0 = vector.load %arg1[%c0, %c0_0] : memref<16x128xbf16, #tpu.memory_space<vmem>>, vector<16x128xbf16>
    %c0_1 = arith.constant 0 : index
    %c0_2 = arith.constant 0 : index
    %1 = vector.load %arg2[%c0_1, %c0_2] : memref<128x128xbf16, #tpu.memory_space<vmem>>, vector<128x128xbf16>
    %cst = arith.constant dense<0.000000e+00> : vector<16x128xf32>
    %2 = tpu.matmul %0, %1, %cst {dimension_numbers = #tpu.dot_dimension_numbers<[1], [0], [0], [1], [0, 0, 1, 1], [], []>} : vector<16x128xbf16>, vector<128x128xbf16>, vector<16x128xf32> -> vector<16x128xf32>
    %3 = arith.truncf %2 : vector<16x128xf32> to vector<16x128xbf16>
    %c0_3 = arith.constant 0 : index
    %c0_4 = arith.constant 0 : index
    %4 = vector.load %arg3[%c0_3, %c0_4] : memref<16x128xbf16, #tpu.memory_space<vmem>>, vector<16x128xbf16>
    tpu.vector_store %arg3[%c0_3, %c0_4], %3 {strides = array<i32>} : memref<16x128xbf16, #tpu.memory_space<vmem>>, vector<16x128xbf16>,
    return
  }
  func.func @transform_0(%arg0: i32) -> (i32, i32) {
    %c0_i32 = arith.constant 0 : i32
    %c0_i32_0 = arith.constant 0 : i32
    return %arg0, %c0_i32 : i32, i32
  }
  func.func @transform_1(%arg0: i32) -> (i32, i32) {
    %c0_i32 = arith.constant 0 : i32
    %c0_i32_0 = arith.constant 0 : i32
    %c0_i32_1 = arith.constant 0 : i32
    return %c0_i32, %c0_i32_0 : i32, i32
  }
  func.func @transform_2(%arg0: i32) -> (i32, i32) {
    %c0_i32 = arith.constant 0 : i32
    %c0_i32_0 = arith.constant 0 : i32
    return %arg0, %c0_i32 : i32, i32
  }
}

</mosaic_0001>

<llo_original>
// kernel: tpu_custom_call.1
$region0: #{tpu_custom_call.1}
  #allocation0 [shape = 'u32[]', space=smem, size = 0x4, offset = 0x4, fixed_abs, tag = 'smem constant byte address 0x4 - core index']
  #allocation1 [shape = 'u32[144,128]{1,0:T(1,128)}', space=vmem, size = 0x12000, scoped, tag = 'internal scratch']
  %s0 = inlined_call_operand.hbm [shape: bf16[16,128], index: 0, kind: input, shape index: {}]
  %s1 = inlined_call_operand.hbm [shape: bf16[128,128], index: 1, kind: input, shape index: {}]
  %s2 = inlined_call_operand.hbm [shape: bf16[16,128], index: 2, kind: output, shape index: {}]
  %s3 = sld [smem:[#allocation0]]
  $region26: #{tpu_custom_call.1} parent=0
    _
  %s5 = ssub.s32 1, %s3
  %s6 = scalar_select 0, %s5, %s3
  $region1: #{tpu_custom_call.1} parent=0
    #allocation2 [shape = 'u8[4096]{0}', space=vmem, size = 0x1000, scoped, tag = 'input window, operand 0, single buffered']
    #allocation3 [shape = 's32[1]{0}', space=sflag, size = 0x4, scoped, tag = 'scoped memory for tpu_custom_call.1']
    #allocation4 [shape = 's32[1]{0}', space=sflag, size = 0x4, scoped, tag = 'scoped memory for tpu_custom_call.1']
    #allocation5 [shape = 'u8[32768]{0}', space=vmem, size = 0x8000, scoped, tag = 'input window, operand 1, single buffered']
    #allocation6 [shape = 's32[1]{0}', space=sflag, size = 0x4, scoped, tag = 'scoped memory for tpu_custom_call.1']
    #allocation7 [shape = 'u8[4096]{0}', space=vmem, size = 0x1000, scoped, tag = 'output window, operand 0, single buffered']
    %7 = vsyncpa [#allocation3], 0
    %8 = vsyncpa [#allocation6], 0
    %9 = vsyncpa [#allocation4], 0
    // Predicated region
    $region2: #{tpu_custom_call.1} parent=1 // pred_check
      _
    $region3: #{tpu_custom_call.1} parent=1 // pred_check_branch
      %11 = sbr.rel (0) target = $region5
    $region4: #{tpu_custom_call.1} parent=1 // pred_region
      %s13 = ssub.s32 128, 128
      %14 = vsyncadd [#allocation3], %s13
      %s15 = sshll.u32 [#allocation2], 4
      %s16 = int_to_ptr.vmem [resolvable:$true] %s15
      %21 = dma.hbm_to_vmem [thread:$0]  %s0, 128, %s16, [#allocation3], 64, 64, 4
    $region5: #{tpu_custom_call.1} parent=1 // pred_fallthru
      _
    // Predicated region
    $region6: #{tpu_custom_call.1} parent=1 // pred_check
      _
    $region7: #{tpu_custom_call.1} parent=1 // pred_check_branch
      %23 = sbr.rel (0) target = $region9
    $region8: #{tpu_custom_call.1} parent=1 // pred_region
      %s25 = ssub.s32 1024, 1024
      %26 = vsyncadd [#allocation6], %s25
      %s27 = sshll.u32 [#allocation5], 4
      %s28 = int_to_ptr.vmem [resolvable:$true] %s27
      %33 = dma.hbm_to_vmem [thread:$0]  %s1, 1024, %s28, [#allocation6], 64, 64, 4
    $region9: #{tpu_custom_call.1} parent=1 // pred_fallthru
      _
    // Predicated region
    $region10: #{tpu_custom_call.1} parent=1 // pred_check
      _
    $region11: #{tpu_custom_call.1} parent=1 // pred_check_branch
      %35 = sbr.rel (0) target = $region13
    $region12: #{tpu_custom_call.1} parent=1 // pred_region
      %36 = dma.done [#allocation3], 128
    $region13: #{tpu_custom_call.1} parent=1 // pred_fallthru
      _
    // Predicated region
    $region14: #{tpu_custom_call.1} parent=1 // pred_check
      _
    $region15: #{tpu_custom_call.1} parent=1 // pred_check_branch
      %38 = sbr.rel (0) target = $region17
    $region16: #{tpu_custom_call.1} parent=1 // pred_region
      %39 = dma.done [#allocation6], 1024
    $region17: #{tpu_custom_call.1} parent=1 // pred_fallthru
      _
    %v41 = vld [vmem:[#allocation2] sm:$0xf]
    %v42 = vld [vmem:[#allocation2 + $0x4] sm:$0xf]
    %v43 = vld [vmem:[#allocation5] sm:$0xf]
    %v44 = vld [vmem:[#allocation5 + $0x4] sm:$0xf]
    %v45 = vld [vmem:[#allocation5 + $0x8] sm:$0xf]
    %v46 = vld [vmem:[#allocation5 + $0xc] sm:$0xf]
    %v47 = vld [vmem:[#allocation5 + $0x10] sm:$0xf]
    %v48 = vld [vmem:[#allocation5 + $0x14] sm:$0xf]
    %v49 = vld [vmem:[#allocation5 + $0x18] sm:$0xf]
    %v50 = vld [vmem:[#allocation5 + $0x1c] sm:$0xf]
    %v51 = vld [vmem:[#allocation5 + $0x20] sm:$0xf]
    %v52 = vld [vmem:[#allocation5 + $0x24] sm:$0xf]
    %v53 = vld [vmem:[#allocation5 + $0x28] sm:$0xf]
    %v54 = vld [vmem:[#allocation5 + $0x2c] sm:$0xf]
    %v55 = vld [vmem:[#allocation5 + $0x30] sm:$0xf]
    %v56 = vld [vmem:[#allocation5 + $0x34] sm:$0xf]
    %v57 = vld [vmem:[#allocation5 + $0x38] sm:$0xf]
    %v58 = vld [vmem:[#allocation5 + $0x3c] sm:$0xf]
    %v61 = vunpack.c.l.b16 %v41
    %v62 = vunpack.c.l.b16 %v42
    %v63 = vpack.c.b16 %v62, %v61
    %v81 = vunpack.c.l.b16 %v43
    %v82 = vunpack.c.l.b16 %v44
    %v83 = vunpack.c.l.b16 %v45
    %v84 = vunpack.c.l.b16 %v46
    %v85 = vunpack.c.l.b16 %v47
    %v86 = vunpack.c.l.b16 %v48
    %v87 = vunpack.c.l.b16 %v49
    %v88 = vunpack.c.l.b16 %v50
    %v89 = vunpack.c.l.b16 %v51
    %v90 = vunpack.c.l.b16 %v52
    %v91 = vunpack.c.l.b16 %v53
    %v92 = vunpack.c.l.b16 %v54
    %v93 = vunpack.c.l.b16 %v55
    %v94 = vunpack.c.l.b16 %v56
    %v95 = vunpack.c.l.b16 %v57
    %v96 = vunpack.c.l.b16 %v58
    %v97 = vpack.c.b16 %v82, %v81
    %v98 = vpack.c.b16 %v84, %v83
    %v99 = vpack.c.b16 %v86, %v85
    %v100 = vpack.c.b16 %v88, %v87
    %v101 = vpack.c.b16 %v90, %v89
    %v102 = vpack.c.b16 %v92, %v91
    %v103 = vpack.c.b16 %v94, %v93
    %v104 = vpack.c.b16 %v96, %v95
    %113 = vmatprep.subr.bf16.mxu0 0
    %114 = vmatpush1.bf16.msra.mxu0 %v104
    %115 = vmatprep.subr.bf16.mxu0 0
    %116 = vmatpush1.bf16.msra.mxu0 %v103
    %117 = vmatprep.subr.bf16.mxu0 0
    %118 = vmatpush1.bf16.msra.mxu0 %v102
    %119 = vmatprep.subr.bf16.mxu0 0
    %120 = vmatpush1.bf16.msra.mxu0 %v101
    %121 = vmatprep.subr.bf16.mxu0 0
    %122 = vmatpush1.bf16.msra.mxu0 %v100
    %123 = vmatprep.subr.bf16.mxu0 0
    %124 = vmatpush1.bf16.msra.mxu0 %v99
    %125 = vmatprep.subr.bf16.mxu0 0
    %126 = vmatpush1.bf16.msra.mxu0 %v98
    %127 = vmatprep.subr.bf16.mxu0 0
    %128 = vmatpush1.bf16.msra.mxu0 %v97
    %129 = vmatprep.subr.bf16.mxu0 0
    %130 = vmatpush2.bf16.msra.mxu0 0
    %131 = vmatprep.subr.bf16.mxu0 0
    %132 = vmatpush2.bf16.msra.mxu0 0
    %133 = vmatprep.subr.bf16.mxu0 0
    %134 = vmatpush2.bf16.msra.mxu0 0
    %135 = vmatprep.subr.bf16.mxu0 0
    %136 = vmatpush2.bf16.msra.mxu0 0
    %137 = vmatprep.subr.bf16.mxu0 0
    %138 = vmatpush2.bf16.msra.mxu0 0
    %139 = vmatprep.subr.bf16.mxu0 0
    %140 = vmatpush2.bf16.msra.mxu0 0
    %141 = vmatprep.subr.bf16.mxu0 0
    %142 = vmatpush2.bf16.msra.mxu0 0
    %143 = vmatprep.subr.bf16.mxu0 0
    %144 = vmatpush2.bf16.msra.mxu0 0
    %145 = vmatprep.mubr.bf16.mxu0 0
    %146 = vmatmul.mubr.bf16.gmra.mxu0 %v63
    %v147 = vpop.f32.mrf.mxu0
    %v148 = vadd.f32 0.0, %v147
    %v149 = vpop.f32.mrf.mxu0
    %v150 = vpop.f32.mrf.mxu0
    %v151 = vadd.f32 0.0, %v150
    %v152 = vpop.f32.mrf.mxu0
    %153 = vdwg.mxu0
    %v154 = vpack.c.bf16 %v151, %v148
    %v156 = vunpack.c.l.b16 %v154
    %v157 = vunpack.c.h.b16 %v154
    %v158 = vpack.c.b16 %v156, %v156
    %v159 = vpack.c.b16 %v157, %v157
    %162 = vst [vmem:[#allocation7] sm:$0xf] %v158
    %163 = vst [vmem:[#allocation7 + $0x4] sm:$0xf] %v159
    // Predicated region
    $region18: #{tpu_custom_call.1} parent=1 // pred_check
      _
    $region19: #{tpu_custom_call.1} parent=1 // pred_check_branch
      %165 = sbr.rel (0) target = $region21
    $region20: #{tpu_custom_call.1} parent=1 // pred_region
      %s167 = ssub.s32 128, 128
      %168 = vsyncadd [#allocation4], %s167
      %s169 = sshll.u32 [#allocation7], 4
      %s170 = int_to_ptr.vmem [resolvable:$true] %s169
      %175 = dma.vmem_to_hbm [thread:$0]  %s170, 128, %s2, [#allocation4], 64, 64, 4
    $region21: #{tpu_custom_call.1} parent=1 // pred_fallthru
      _
    // Predicated region
    $region22: #{tpu_custom_call.1} parent=1 // pred_check
      _
    $region23: #{tpu_custom_call.1} parent=1 // pred_check_branch
      %177 = sbr.rel (0) target = $region25
    $region24: #{tpu_custom_call.1} parent=1 // pred_region
      %178 = dma.done [#allocation4], 128
    $region25: #{tpu_custom_call.1} parent=1 // pred_fallthru
      _
    %179 = vsyncpa [#allocation3], 1
    %180 = vsyncpa [#allocation6], 1
    %181 = vsyncpa [#allocation4], 1

</llo_original>
